<compile_context>
chip_gen: v7x
topology: tpu7x:2x2x1
jax: 0.10.0
libtpu: 0.0.40
codegen_flags: <defaults>
</compile_context>

<pallas_src>
import jax
import jax.numpy as jnp
from jax.experimental import pallas as pl
from jax.experimental.pallas import tpu as pltpu

_LANES = 128
_TARGET_TILE_BYTES = 512 * 1024  # per-tile size target (x4 buffers when pipelined)


def _copy_kernel(x_ref, o_ref):
    # Elementwise pass-through of the current (block_rows, 128) tile (full-width vst).
    o_ref[...] = x_ref[...]


def _min_sublanes(dtype) -> int:
    # dtype-aware min tile: (8,128) for 32-bit, (16,128) for bf16/fp16, (32,128) for 8-bit.
    itemsize = jnp.dtype(dtype).itemsize
    return {4: 8, 2: 16, 1: 32}.get(itemsize, 8)


def _pallas_copy_2d(x2d):
    """Elementwise pass-through of a (rows, 128)-lane-dense 2-D slab via Pallas."""
    rows, lanes = x2d.shape
    dtype = x2d.dtype
    itemsize = jnp.dtype(dtype).itemsize
    sub = _min_sublanes(dtype)

    # ~512 KiB tiles, rounded down to the dtype sublane quantum.
    block_rows = max(sub, (_TARGET_TILE_BYTES // (lanes * itemsize)) // sub * sub)

    if rows <= block_rows:
        # Single block covering the whole array: block_shape == array dims is
        # always legal (no (8,128) divisibility requirement), zero tail handling.
        block_rows = rows
        grid = (1,)
    else:
        # Partial final row-block (if any) is masked by Pallas automatically.
        grid = (pl.cdiv(rows, block_rows),)

    return pl.pallas_call(
        _copy_kernel,
        out_shape=jax.ShapeDtypeStruct((rows, lanes), dtype),
        grid_spec=pltpu.PrefetchScalarGridSpec(
            num_scalar_prefetch=0,
            grid=grid,
            in_specs=[pl.BlockSpec((block_rows, lanes), lambda i: (i, 0))],
            out_specs=pl.BlockSpec((block_rows, lanes), lambda i: (i, 0)),
        ),
        input_output_aliases={0: 0},
        compiler_params=pltpu.CompilerParams(
            dimension_semantics=("parallel",),
        ),
    )(x2d)


def base_model_forward(x):
    """Exact BaseModel.inference/forward semantics: returns x unchanged in value,
    shape and dtype, with the elementwise data path executed in a Pallas kernel.
    """
    orig_shape = x.shape
    total = 1
    for d in orig_shape:
        total *= int(d)

    if total == 0:
        # Zero-element tensor: nothing to tile; identity contract.
        return x

    x_flat = jnp.reshape(x, (total,))

    if total % _LANES == 0:
        rows = total // _LANES
        out2d = _pallas_copy_2d(jnp.reshape(x_flat, (rows, _LANES)))
        return jnp.reshape(out2d, orig_shape)

    # Ragged tail (total not a multiple of 128): run the aligned bulk through the
    # kernel and carry the (<128-element) remainder outside it — no full-tensor
    # padding copy.
    main = (total // _LANES) * _LANES
    if main == 0:
        # Fewer than 128 elements total: identity contract, nothing to tile.
        return x
    rows = main // _LANES
    main_out = _pallas_copy_2d(jnp.reshape(x_flat[:main], (rows, _LANES)))
    out_flat = jnp.concatenate([jnp.reshape(main_out, (main,)), x_flat[main:]])
    return jnp.reshape(out_flat, orig_shape)


if __name__ == "__main__":
    key = jax.random.PRNGKey(0)

    # Small NCHW input consistent with an image-segmentation UNet front end.
    x = jax.random.normal(key, (2, 4, 16, 16), dtype=jnp.float32)
    y = jax.block_until_ready(base_model_forward(x))
    assert y.shape == x.shape and y.dtype == x.dtype
    assert bool(jnp.allclose(y, x)), "forward pass-through mismatch (small)"

    # Exercise the multi-block tiled path (grid > 1, 2048 rows of 128 f32 lanes).
    x_big = jax.random.normal(key, (2, 4, 128, 256), dtype=jnp.float32)
    y_big = jax.block_until_ready(base_model_forward(x_big))
    assert y_big.shape == x_big.shape and y_big.dtype == x_big.dtype
    assert bool(jnp.allclose(y_big, x_big)), "forward pass-through mismatch (tiled)"

    # Exercise the ragged-tail path (16095 elements, not a multiple of 128).
    x_rag = jax.random.normal(key, (3, 5, 37, 29), dtype=jnp.float32)
    y_rag = jax.block_until_ready(base_model_forward(x_rag))
    assert y_rag.shape == x_rag.shape and y_rag.dtype == x_rag.dtype
    assert bool(jnp.allclose(y_rag, x_rag)), "forward pass-through mismatch (ragged)"

    print("KERNEL_OK")
</pallas_src>

<mosaic_0001>
module attributes {stable_mosaic.version = 11 : i64} {
  func.func @_copy_kernel(%arg0: i32, %arg1: memref<16x128xf32, #tpu.memory_space<vmem>>, %arg2: memref<16x128xf32, #tpu.memory_space<vmem>>) attributes {dimension_semantics = [#tpu.dimension_semantics<parallel>], iteration_bounds = array<i64: 1>, scalar_prefetch = 0 : i64, scratch_operands = 0 : i64, tpu.core_type = #tpu.core_type<tc>, window_params = [{transform_indices = @transform_0, window_bounds = array<i64: 16, 128>}, {transform_indices = @transform_1, window_bounds = array<i64: 16, 128>}]} {
    %c0 = arith.constant 0 : index
    %c0_0 = arith.constant 0 : index
    %0 = vector.load %arg1[%c0, %c0_0] : memref<16x128xf32, #tpu.memory_space<vmem>>, vector<16x128xf32>
    %c0_1 = arith.constant 0 : index
    %c0_2 = arith.constant 0 : index
    %1 = vector.load %arg2[%c0_1, %c0_2] : memref<16x128xf32, #tpu.memory_space<vmem>>, vector<16x128xf32>
    tpu.vector_store %arg2[%c0_1, %c0_2], %0 {strides = array<i32>} : memref<16x128xf32, #tpu.memory_space<vmem>>, vector<16x128xf32>,
    return
  }
  func.func @transform_0(%arg0: i32) -> (i32, i32) {
    %c0_i32 = arith.constant 0 : i32
    %c0_i32_0 = arith.constant 0 : i32
    return %arg0, %c0_i32 : i32, i32
  }
  func.func @transform_1(%arg0: i32) -> (i32, i32) {
    %c0_i32 = arith.constant 0 : i32
    %c0_i32_0 = arith.constant 0 : i32
    return %arg0, %c0_i32 : i32, i32
  }
}

</mosaic_0001>

<llo_original>
// kernel: tpu_custom_call.1
$region0: #{tpu_custom_call.1}
  #allocation0 [shape = 'u32[]', space=smem, size = 0x4, offset = 0x4, fixed_abs, tag = 'smem constant byte address 0x4 - core index']
  #allocation1 [shape = 'u32[144,128]{1,0:T(1,128)}', space=vmem, size = 0x12000, scoped, tag = 'internal scratch']
  %s0 = inlined_call_operand.hbm [shape: f32[16,128], index: 0, kind: input, shape index: {}, may-alias: {0,1}]
  %s1 = inlined_call_operand.hbm [shape: f32[16,128], index: 1, kind: output, shape index: {}, may-alias: {0,1}]
  %s2 = sld [smem:[#allocation0]]
  $region18: #{tpu_custom_call.1} parent=0
    _
  %s4 = ssub.s32 1, %s2
  %s5 = scalar_select 0, %s4, %s2
  $region1: #{tpu_custom_call.1} parent=0
    #allocation2 [shape = 'u8[8192]{0}', space=vmem, size = 0x2000, scoped, tag = 'input window, operand 0, single buffered']
    #allocation3 [shape = 's32[1]{0}', space=sflag, size = 0x4, scoped, tag = 'scoped memory for tpu_custom_call.1']
    #allocation4 [shape = 's32[1]{0}', space=sflag, size = 0x4, scoped, tag = 'scoped memory for tpu_custom_call.1']
    #allocation5 [shape = 'u8[8192]{0}', space=vmem, size = 0x2000, scoped, tag = 'output window, operand 0, single buffered']
    %6 = vsyncpa [#allocation3], 0
    %7 = vsyncpa [#allocation4], 0
    // Predicated region
    $region2: #{tpu_custom_call.1} parent=1 // pred_check
      _
    $region3: #{tpu_custom_call.1} parent=1 // pred_check_branch
      %9 = sbr.rel (0) target = $region5
    $region4: #{tpu_custom_call.1} parent=1 // pred_region
      %s11 = ssub.s32 256, 256
      %12 = vsyncadd [#allocation3], %s11
      %s13 = sshll.u32 [#allocation2], 4
      %s14 = int_to_ptr.vmem [resolvable:$true] %s13
      %19 = dma.hbm_to_vmem [thread:$0]  %s0, 256, %s14, [#allocation3], 128, 128, 8
    $region5: #{tpu_custom_call.1} parent=1 // pred_fallthru
      _
    // Predicated region
    $region6: #{tpu_custom_call.1} parent=1 // pred_check
      _
    $region7: #{tpu_custom_call.1} parent=1 // pred_check_branch
      %21 = sbr.rel (0) target = $region9
    $region8: #{tpu_custom_call.1} parent=1 // pred_region
      %22 = dma.done [#allocation3], 256
    $region9: #{tpu_custom_call.1} parent=1 // pred_fallthru
      _
    %v23 = vld [vmem:[#allocation2] sm:$0xff]
    %v24 = vld [vmem:[#allocation2 + $0x8] sm:$0xff]
    %25 = vst [vmem:[#allocation5] sm:$0xff] %v23
    %26 = vst [vmem:[#allocation5 + $0x8] sm:$0xff] %v24
    // Predicated region
    $region10: #{tpu_custom_call.1} parent=1 // pred_check
      _
    $region11: #{tpu_custom_call.1} parent=1 // pred_check_branch
      %28 = sbr.rel (0) target = $region13
    $region12: #{tpu_custom_call.1} parent=1 // pred_region
      %s30 = ssub.s32 256, 256
      %31 = vsyncadd [#allocation4], %s30
      %s32 = sshll.u32 [#allocation5], 4
      %s33 = int_to_ptr.vmem [resolvable:$true] %s32
      %38 = dma.vmem_to_hbm [thread:$0]  %s33, 256, %s1, [#allocation4], 128, 128, 8
    $region13: #{tpu_custom_call.1} parent=1 // pred_fallthru
      _
    // Predicated region
    $region14: #{tpu_custom_call.1} parent=1 // pred_check
      _
    $region15: #{tpu_custom_call.1} parent=1 // pred_check_branch
      %40 = sbr.rel (0) target = $region17
    $region16: #{tpu_custom_call.1} parent=1 // pred_region
      %41 = dma.done [#allocation4], 256
    $region17: #{tpu_custom_call.1} parent=1 // pred_fallthru
      _
    %42 = vsyncpa [#allocation3], 1
    %43 = vsyncpa [#allocation4], 1

</llo_original>
